<compile_context>
chip_gen: v7x
topology: tpu7x:2x2x1
jax: 0.10.0
libtpu: 0.0.40
codegen_flags: <defaults>
</compile_context>

<pallas_src>
import functools

import jax
import jax.numpy as jnp
from jax.experimental import pallas as pl
from jax.experimental.pallas import tpu as pltpu


HIDDEN_PAD = 64  # sublane-aligned padded hidden size (>= 50)


def mlp_kernel(x_ref, w_ref, o_ref):
    # x_ref: (1, Nblk)      input row, batch on the lane axis
    # w_ref: (Hp, Hp + 8)   columns [0:Hp]  = torch-style (out, in) layer-2 weight
    #                       column  Hp+0   = w1, Hp+1 = b1, Hp+2 = b2,
    #                       column  Hp+3   = w3, Hp+4 row 0 = b3
    # o_ref: (1, Nblk)
    Hp = w_ref.shape[0]
    x = x_ref[...]                         # (1, Nblk)
    w2 = w_ref[:, :Hp]                     # (Hp, Hp)
    w1 = w_ref[:, Hp + 0:Hp + 1]           # (Hp, 1)
    b1 = w_ref[:, Hp + 1:Hp + 2]           # (Hp, 1)
    b2 = w_ref[:, Hp + 2:Hp + 3]           # (Hp, 1)
    w3 = w_ref[:, Hp + 3:Hp + 4]           # (Hp, 1)
    b3 = w_ref[0:1, Hp + 4:Hp + 5]         # (1, 1)

    # Layer 1 (in_features=1): rank-1 outer product on the VPU (no K=1 MXU push).
    h1 = jnp.tanh(w1 * x + b1)             # (Hp, Nblk)

    # Layer 2: lane-dense MXU matmul (Hp,Hp) @ (Hp,Nblk), f32 accumulate.
    h2 = jnp.dot(w2, h1,
                 preferred_element_type=jnp.float32,
                 precision=jax.lax.Precision.HIGHEST) + b2
    h2 = jnp.tanh(h2)                      # (Hp, Nblk)

    # Layer 3 (out_features=1): VPU multiply + sublane (XLU) reduce,
    # keeping the (1, Nblk) output lane-dense (unmasked store).
    out = jnp.sum(h2 * w3, axis=0, keepdims=True) + b3   # (1, Nblk)
    o_ref[...] = out.astype(o_ref.dtype)


def _round_up(v, m):
    return (v + m - 1) // m * m


def pack_params(params, hidden_pad=HIDDEN_PAD):
    """One-time packing of torch-convention params into a single (Hp, Hp+8)
    feature-major, zero-padded slab. Call once at init; NOT in the hot path."""
    w1, b1 = params["w1"], params["b1"]    # (H, 1), (H,)
    w2, b2 = params["w2"], params["b2"]    # (H, H), (H,)
    w3, b3 = params["w3"], params["b3"]    # (1, H), (1,)
    H = w2.shape[0]
    Hp = max(hidden_pad, _round_up(H, 8))
    slab = jnp.zeros((Hp, Hp + 8), jnp.float32)
    slab = slab.at[:H, :H].set(w2.astype(jnp.float32))
    slab = slab.at[:H, Hp + 0].set(w1[:, 0].astype(jnp.float32))
    slab = slab.at[:H, Hp + 1].set(b1.astype(jnp.float32))
    slab = slab.at[:H, Hp + 2].set(b2.astype(jnp.float32))
    slab = slab.at[:H, Hp + 3].set(w3[0, :].astype(jnp.float32))
    slab = slab.at[0, Hp + 4].set(b3[0].astype(jnp.float32))
    return slab


@jax.jit
def nn_model_forward(x, packed):
    """x: (N, 1) float32. packed: (Hp, Hp+8) slab from pack_params()."""
    N = x.shape[0]
    Hp = packed.shape[0]

    # Large lane tiles (up to 4096) keep per-grid-step overhead negligible;
    # for small N the grid collapses to a single step.
    block_n = min(4096, _round_up(N, 128))
    Np = _round_up(N, block_n)
    grid_n = Np // block_n

    # Only x is packed per call (single cheap pad/scatter); weights are
    # pre-packed outside the hot path.
    x_t = jnp.zeros((1, Np), jnp.float32).at[0, :N].set(x[:, 0])

    out_t = pl.pallas_call(
        mlp_kernel,
        out_shape=jax.ShapeDtypeStruct((1, Np), jnp.float32),
        grid=(grid_n,),
        in_specs=[
            pl.BlockSpec((1, block_n), lambda i: (0, i)),       # x walks lane blocks
            pl.BlockSpec((Hp, Hp + 8), lambda i: (0, 0)),       # weight slab resident
        ],
        out_specs=pl.BlockSpec((1, block_n), lambda i: (0, i)),
        compiler_params=pltpu.CompilerParams(
            dimension_semantics=("parallel",)),                  # v7x: shard over 2 TCs
    )(x_t, packed)

    return out_t[0, :N].reshape(N, 1)


def init_params(key, hidden_size=50):
    """PyTorch nn.Linear default init U(-1/sqrt(fan_in), 1/sqrt(fan_in)),
    weights stored in torch (out_features, in_features) convention."""
    ks = jax.random.split(key, 6)

    def uniform(k, shape, fan_in):
        bound = 1.0 / jnp.sqrt(jnp.float32(fan_in))
        return jax.random.uniform(k, shape, jnp.float32, -bound, bound)

    H = hidden_size
    return {
        "w1": uniform(ks[0], (H, 1), 1),
        "b1": uniform(ks[1], (H,), 1),
        "w2": uniform(ks[2], (H, H), H),
        "b2": uniform(ks[3], (H,), H),
        "w3": uniform(ks[4], (1, H), H),
        "b3": uniform(ks[5], (1,), H),
    }


if __name__ == "__main__":
    key = jax.random.PRNGKey(0)
    H = 50
    params = init_params(key, hidden_size=H)

    # One-time weight packing (hoisted out of the per-call path).
    packed = jax.block_until_ready(pack_params(params))

    # Mirror the script's x = np.linspace(0, 10, 100) reshaped to (100, 1)
    x = jnp.linspace(0.0, 10.0, 100, dtype=jnp.float32).reshape(100, 1)

    out = jax.block_until_ready(nn_model_forward(x, packed))

    # Pure-JAX reference (torch semantics: y = x @ W.T + b)
    ref = jnp.tanh(x @ params["w1"].T + params["b1"])
    ref = jnp.tanh(ref @ params["w2"].T + params["b2"])
    ref = ref @ params["w3"].T + params["b3"]

    assert out.shape == (100, 1)
    assert jnp.allclose(out, ref, atol=1e-5, rtol=1e-5), "mismatch vs reference"
    print("KERNEL_OK")
</pallas_src>

<mosaic_0001>
module attributes {stable_mosaic.version = 11 : i64} {
  func.func @mlp_kernel(%arg0: i32, %arg1: memref<1x128xf32, #tpu.memory_space<vmem>>, %arg2: memref<64x72xf32, #tpu.memory_space<vmem>>, %arg3: memref<1x128xf32, #tpu.memory_space<vmem>>) attributes {dimension_semantics = [#tpu.dimension_semantics<parallel>], iteration_bounds = array<i64: 1>, scalar_prefetch = 0 : i64, scratch_operands = 0 : i64, tpu.core_type = #tpu.core_type<tc>, window_params = [{transform_indices = @transform_0, window_bounds = array<i64: 1, 128>}, {pipeline_mode = #tpu.pipeline_mode<synchronous>, transform_indices = @transform_1, window_bounds = array<i64: 64, 72>}, {transform_indices = @transform_2, window_bounds = array<i64: 1, 128>}]} {
    %c0 = arith.constant 0 : index
    %c0_0 = arith.constant 0 : index
    %0 = vector.load %arg1[%c0, %c0_0] : memref<1x128xf32, #tpu.memory_space<vmem>>, vector<1x128xf32>
    %c0_1 = arith.constant 0 : index
    %c0_2 = arith.constant 0 : index
    %1 = vector.load %arg2[%c0_1, %c0_2] : memref<64x72xf32, #tpu.memory_space<vmem>>, vector<64x64xf32>
    %c0_3 = arith.constant 0 : index
    %c64 = arith.constant 64 : index
    %2 = vector.load %arg2[%c0_3, %c64] : memref<64x72xf32, #tpu.memory_space<vmem>>, vector<64x1xf32>
    %c0_4 = arith.constant 0 : index
    %c65 = arith.constant 65 : index
    %3 = vector.load %arg2[%c0_4, %c65] : memref<64x72xf32, #tpu.memory_space<vmem>>, vector<64x1xf32>
    %c0_5 = arith.constant 0 : index
    %c66 = arith.constant 66 : index
    %4 = vector.load %arg2[%c0_5, %c66] : memref<64x72xf32, #tpu.memory_space<vmem>>, vector<64x1xf32>
    %c0_6 = arith.constant 0 : index
    %c67 = arith.constant 67 : index
    %5 = vector.load %arg2[%c0_6, %c67] : memref<64x72xf32, #tpu.memory_space<vmem>>, vector<64x1xf32>
    %c0_7 = arith.constant 0 : index
    %c68 = arith.constant 68 : index
    %6 = vector.load %arg2[%c0_7, %c68] : memref<64x72xf32, #tpu.memory_space<vmem>>, vector<1x1xf32>
    %7 = vector.broadcast %2 : vector<64x1xf32> to vector<64x128xf32>
    %8 = vector.broadcast %0 : vector<1x128xf32> to vector<64x128xf32>
    %9 = arith.mulf %7, %8 : vector<64x128xf32>
    %10 = vector.broadcast %3 : vector<64x1xf32> to vector<64x128xf32>
    %11 = arith.addf %9, %10 : vector<64x128xf32>
    %12 = math.tanh %11 : vector<64x128xf32>
    %cst = arith.constant dense<0.000000e+00> : vector<64x128xf32>
    %13 = tpu.matmul %1, %12, %cst {dimension_numbers = #tpu.dot_dimension_numbers<[1], [0], [0], [1], [0, 0, 1, 1], [], []>, precision = #tpu.contract_precision<fp32>} : vector<64x64xf32>, vector<64x128xf32>, vector<64x128xf32> -> vector<64x128xf32>
    %14 = vector.broadcast %4 : vector<64x1xf32> to vector<64x128xf32>
    %15 = arith.addf %13, %14 : vector<64x128xf32>
    %16 = math.tanh %15 : vector<64x128xf32>
    %17 = vector.broadcast %5 : vector<64x1xf32> to vector<64x128xf32>
    %18 = arith.mulf %16, %17 : vector<64x128xf32>
    %cst_8 = arith.constant dense<0.000000e+00> : vector<128xf32>
    %19 = vector.multi_reduction <add>, %18, %cst_8 [0] : vector<64x128xf32> to vector<128xf32>
    %20 = vector.shape_cast %19 : vector<128xf32> to vector<1x128xf32>
    %21 = vector.broadcast %6 : vector<1x1xf32> to vector<1x128xf32>
    %22 = arith.addf %20, %21 : vector<1x128xf32>
    %c0_9 = arith.constant 0 : index
    %c0_10 = arith.constant 0 : index
    %23 = vector.load %arg3[%c0_9, %c0_10] : memref<1x128xf32, #tpu.memory_space<vmem>>, vector<1x128xf32>
    tpu.vector_store %arg3[%c0_9, %c0_10], %22 {strides = array<i32>} : memref<1x128xf32, #tpu.memory_space<vmem>>, vector<1x128xf32>,
    return
  }
  func.func @transform_0(%arg0: i32) -> (i32, i32) {
    %c0_i32 = arith.constant 0 : i32
    %c0_i32_0 = arith.constant 0 : i32
    return %c0_i32, %arg0 : i32, i32
  }
  func.func @transform_1(%arg0: i32) -> (i32, i32) {
    %c0_i32 = arith.constant 0 : i32
    %c0_i32_0 = arith.constant 0 : i32
    %c0_i32_1 = arith.constant 0 : i32
    return %c0_i32, %c0_i32_0 : i32, i32
  }
  func.func @transform_2(%arg0: i32) -> (i32, i32) {
    %c0_i32 = arith.constant 0 : i32
    %c0_i32_0 = arith.constant 0 : i32
    return %c0_i32, %arg0 : i32, i32
  }
}

</mosaic_0001>

<llo_original>
// kernel: nn_model_forward.1
$region0: #{nn_model_forward.1}
  #allocation0 [shape = 'u32[]', space=smem, size = 0x4, offset = 0x4, fixed_abs, tag = 'smem constant byte address 0x4 - core index']
  #allocation1 [shape = 'u32[144,128]{1,0:T(1,128)}', space=vmem, size = 0x12000, scoped, tag = 'internal scratch']
  %s0 = inlined_call_operand.vmem [shape: f32[1,128], index: 0, kind: input, shape index: {}]
  %s1 = inlined_call_operand.hbm [shape: f32[64,72], index: 1, kind: input, shape index: {}]
  %s2 = inlined_call_operand.vmem [shape: f32[1,128], index: 2, kind: output, shape index: {}]
  %s3 = sld [smem:[#allocation0]]
  $region22: #{nn_model_forward.1} parent=0
    _
  %s5 = ssub.s32 1, %s3
  %s6 = scalar_select 0, %s5, %s3
  $region1: #{nn_model_forward.1} parent=0
    #allocation2 [shape = 'u8[32768]{0}', space=vmem, size = 0x8000, scoped, tag = 'input window, operand 1, single buffered']
    #allocation3 [shape = 's32[1]{0}', space=sflag, size = 0x4, scoped, tag = 'scoped memory for nn_model_forward.1']
    %7 = vsyncpa [#allocation3], 0
    // Predicated region
    $region2: #{nn_model_forward.1} parent=1 // pred_check
      _
    $region3: #{nn_model_forward.1} parent=1 // pred_check_branch
      %9 = sbr.rel (0) target = $region5
    $region4: #{nn_model_forward.1} parent=1 // pred_region
      _
    $region5: #{nn_model_forward.1} parent=1 // pred_fallthru
      _
    // Predicated region
    $region6: #{nn_model_forward.1} parent=1 // pred_check
      _
    $region7: #{nn_model_forward.1} parent=1 // pred_check_branch
      %11 = sbr.rel (0) target = $region9
    $region8: #{nn_model_forward.1} parent=1 // pred_region
      %s13 = ssub.s32 1024, 1024
      %14 = vsyncadd [#allocation3], %s13
      %s15 = sshll.u32 [#allocation2], 4
      %s16 = int_to_ptr.vmem [resolvable:$true] %s15
      %21 = dma.hbm_to_vmem [thread:$0]  %s1, 1024, %s16, [#allocation3], 128, 128, 8
    $region9: #{nn_model_forward.1} parent=1 // pred_fallthru
      _
    // Predicated region
    $region10: #{nn_model_forward.1} parent=1 // pred_check
      _
    $region11: #{nn_model_forward.1} parent=1 // pred_check_branch
      %23 = sbr.rel (0) target = $region13
    $region12: #{nn_model_forward.1} parent=1 // pred_region
      %24 = dma.done [#allocation3], 1024
    $region13: #{nn_model_forward.1} parent=1 // pred_fallthru
      _
    %v25 = vld [vmem:[%s0] sm:$0x1]
    %v26 = vld [vmem:[#allocation2] sm:$0xff]
    %v27 = vld [vmem:[#allocation2 + $0x8] sm:$0xff]
    %v28 = vld [vmem:[#allocation2 + $0x10] sm:$0xff]
    %v29 = vld [vmem:[#allocation2 + $0x18] sm:$0xff]
    %v30 = vld [vmem:[#allocation2 + $0x20] sm:$0xff]
    %v31 = vld [vmem:[#allocation2 + $0x28] sm:$0xff]
    %v32 = vld [vmem:[#allocation2 + $0x30] sm:$0xff]
    %v33 = vld [vmem:[#allocation2 + $0x38] sm:$0xff]
    %v34 = vld [vmem:[#allocation2] sm:$0x1]
    %36 = vset.pattern.permute.xlu0 64
    %37 = vperm.xlu0 %36, %v26
    %v38 = vpop.permute.xlu0 %37
    %41 = vset.pattern.permute.xlu0 64
    %42 = vperm.xlu0 %41, %v27
    %v43 = vpop.permute.xlu0 %42
    %46 = vset.pattern.permute.xlu0 64
    %47 = vperm.xlu0 %46, %v28
    %v48 = vpop.permute.xlu0 %47
    %51 = vset.pattern.permute.xlu0 64
    %52 = vperm.xlu0 %51, %v29
    %v53 = vpop.permute.xlu0 %52
    %56 = vset.pattern.permute.xlu0 64
    %57 = vperm.xlu0 %56, %v30
    %v58 = vpop.permute.xlu0 %57
    %61 = vset.pattern.permute.xlu0 64
    %62 = vperm.xlu0 %61, %v31
    %v63 = vpop.permute.xlu0 %62
    %66 = vset.pattern.permute.xlu0 64
    %67 = vperm.xlu0 %66, %v32
    %v68 = vpop.permute.xlu0 %67
    %71 = vset.pattern.permute.xlu0 64
    %72 = vperm.xlu0 %71, %v33
    %v73 = vpop.permute.xlu0 %72
    %v76 = vlaneseq
    %v77 = vshrl.u32 %v76, 7
    %v78 = vsub.s32 0, %v77
    %v79 = vrot.slane %v25, %v78
    %v81 = vmul.f32 %v38, %v79
    %v82 = vmul.f32 %v43, %v79
    %v83 = vmul.f32 %v48, %v79
    %v84 = vmul.f32 %v53, %v79
    %v85 = vmul.f32 %v58, %v79
    %v86 = vmul.f32 %v63, %v79
    %v87 = vmul.f32 %v68, %v79
    %v88 = vmul.f32 %v73, %v79
    %89 = vset.pattern.permute.xlu0 65
    %90 = vperm.xlu0 %89, %v26
    %v91 = vpop.permute.xlu0 %90
    %93 = vset.pattern.permute.xlu0 65
    %94 = vperm.xlu0 %93, %v27
    %v95 = vpop.permute.xlu0 %94
    %97 = vset.pattern.permute.xlu0 65
    %98 = vperm.xlu0 %97, %v28
    %v99 = vpop.permute.xlu0 %98
    %101 = vset.pattern.permute.xlu0 65
    %102 = vperm.xlu0 %101, %v29
    %v103 = vpop.permute.xlu0 %102
    %105 = vset.pattern.permute.xlu0 65
    %106 = vperm.xlu0 %105, %v30
    %v107 = vpop.permute.xlu0 %106
    %109 = vset.pattern.permute.xlu0 65
    %110 = vperm.xlu0 %109, %v31
    %v111 = vpop.permute.xlu0 %110
    %113 = vset.pattern.permute.xlu0 65
    %114 = vperm.xlu0 %113, %v32
    %v115 = vpop.permute.xlu0 %114
    %117 = vset.pattern.permute.xlu0 65
    %118 = vperm.xlu0 %117, %v33
    %v119 = vpop.permute.xlu0 %118
    %v121 = vadd.f32 %v81, %v91
    %v122 = vadd.f32 %v82, %v95
    %v123 = vadd.f32 %v83, %v99
    %v124 = vadd.f32 %v84, %v103
    %v125 = vadd.f32 %v85, %v107
    %v126 = vadd.f32 %v86, %v111
    %v127 = vadd.f32 %v87, %v115
    %v128 = vadd.f32 %v88, %v119
    %v129 = vtanh.pop %v121
    %v130 = vtanh.pop %v122
    %v131 = vtanh.pop %v123
    %v132 = vtanh.pop %v124
    %v133 = vtanh.pop %v125
    %v134 = vtanh.pop %v126
    %v135 = vtanh.pop %v127
    %v136 = vtanh.pop %v128
    %137 = vset.pattern.permute.xlu0 66
    %138 = vperm.xlu0 %137, %v26
    %v139 = vpop.permute.xlu0 %138
    %141 = vset.pattern.permute.xlu0 66
    %142 = vperm.xlu0 %141, %v27
    %v143 = vpop.permute.xlu0 %142
    %145 = vset.pattern.permute.xlu0 66
    %146 = vperm.xlu0 %145, %v28
    %v147 = vpop.permute.xlu0 %146
    %149 = vset.pattern.permute.xlu0 66
    %150 = vperm.xlu0 %149, %v29
    %v151 = vpop.permute.xlu0 %150
    %153 = vset.pattern.permute.xlu0 66
    %154 = vperm.xlu0 %153, %v30
    %v155 = vpop.permute.xlu0 %154
    %157 = vset.pattern.permute.xlu0 66
    %158 = vperm.xlu0 %157, %v31
    %v159 = vpop.permute.xlu0 %158
    %161 = vset.pattern.permute.xlu0 66
    %162 = vperm.xlu0 %161, %v32
    %v163 = vpop.permute.xlu0 %162
    %165 = vset.pattern.permute.xlu0 66
    %166 = vperm.xlu0 %165, %v33
    %v167 = vpop.permute.xlu0 %166
    %vm169 = vcmask 523264
    %v170 = vsel %vm169, %v26, 0
    %v172 = vsel %vm169, %v27, 0
    %v174 = vsel %vm169, %v28, 0
    %v176 = vsel %vm169, %v29, 0
    %v178 = vsel %vm169, %v30, 0
    %v180 = vsel %vm169, %v31, 0
    %v182 = vsel %vm169, %v32, 0
    %v184 = vsel %vm169, %v33, 0
    %186 = vmatprep.subr.mxu0 0.0
    %v187 = vand.u32 %v129, 4294901760
    %188 = vmatpush1.msra.mxu0 %v187
    %189 = vmatprep.subr.mxu0 0.0
    %v190 = vand.u32 %v130, 4294901760
    %191 = vmatpush1.msra.mxu0 %v190
    %192 = vmatprep.subr.mxu0 0.0
    %v193 = vand.u32 %v131, 4294901760
    %194 = vmatpush1.msra.mxu0 %v193
    %195 = vmatprep.subr.mxu0 0.0
    %v196 = vand.u32 %v132, 4294901760
    %197 = vmatpush1.msra.mxu0 %v196
    %198 = vmatprep.subr.mxu0 0.0
    %v199 = vand.u32 %v133, 4294901760
    %200 = vmatpush1.msra.mxu0 %v199
    %201 = vmatprep.subr.mxu0 0.0
    %v202 = vand.u32 %v134, 4294901760
    %203 = vmatpush1.msra.mxu0 %v202
    %204 = vmatprep.subr.mxu0 0.0
    %v205 = vand.u32 %v135, 4294901760
    %206 = vmatpush1.msra.mxu0 %v205
    %207 = vmatprep.subr.mxu0 0.0
    %v208 = vand.u32 %v136, 4294901760
    %209 = vmatpush1.msra.mxu0 %v208
    %210 = vmatprep.subr.mxu0 0.0
    %211 = vmatpush1.msra.mxu0 0.0
    %212 = vmatprep.subr.mxu0 0.0
    %213 = vmatpush1.msra.mxu0 0.0
    %214 = vmatprep.subr.mxu0 0.0
    %215 = vmatpush1.msra.mxu0 0.0
    %216 = vmatprep.subr.mxu0 0.0
    %217 = vmatpush1.msra.mxu0 0.0
    %218 = vmatprep.subr.mxu0 0.0
    %219 = vmatpush1.msra.mxu0 0.0
    %220 = vmatprep.subr.mxu0 0.0
    %221 = vmatpush1.msra.mxu0 0.0
    %222 = vmatprep.subr.mxu0 0.0
    %223 = vmatpush1.msra.mxu0 0.0
    %224 = vmatprep.subr.mxu0 0.0
    %225 = vmatpush1.msra.mxu0 0.0
    %226 = vmatprep.subr.mxu0 0.0
    %227 = vmatpush1.msra.mxu0 0.0
    %228 = vmatprep.subr.mxu0 0.0
    %229 = vmatpush1.msra.mxu0 0.0
    %230 = vmatprep.subr.mxu0 0.0
    %231 = vmatpush1.msra.mxu0 0.0
    %232 = vmatprep.subr.mxu0 0.0
    %233 = vmatpush1.msra.mxu0 0.0
    %234 = vmatprep.subr.mxu0 0.0
    %235 = vmatpush1.msra.mxu0 0.0
    %236 = vmatprep.subr.mxu0 0.0
    %237 = vmatpush1.msra.mxu0 0.0
    %238 = vmatprep.subr.mxu0 0.0
    %239 = vmatpush1.msra.mxu0 0.0
    %240 = vmatprep.subr.mxu0 0.0
    %241 = vmatpush1.msra.mxu0 0.0
    %242 = vmatprep.subr.mxu0 0.0
    %243 = vmatpush1.msra.mxu0 0.0
    %244 = vmatprep.subr.mxu0 0.0
    %245 = vmatpush1.msra.mxu0 0.0
    %246 = vmatprep.subr.mxu0 0.0
    %247 = vmatpush1.msra.mxu0 0.0
    %248 = vmatprep.subr.mxu0 0.0
    %249 = vmatpush1.msra.mxu0 0.0
    %250 = vmatprep.subr.mxu0 0.0
    %251 = vmatpush1.msra.mxu0 0.0
    %252 = vmatprep.subr.mxu0 0.0
    %253 = vmatpush1.msra.mxu0 0.0
    %254 = vmatprep.subr.mxu0 0.0
    %255 = vmatpush1.msra.mxu0 0.0
    %256 = vmatprep.subr.mxu0 0.0
    %257 = vmatpush1.msra.mxu0 0.0
    %258 = vmatprep.mubr.f32.mxu0 0.0
    %v259 = vand.u32 %v170, 4294901760
    %v260 = vsub.f32 %v170, %v259
    %v261 = vand.u32 %v260, 4294901760
    %v262 = vsub.f32 %v260, %v261
    %v263 = vand.u32 %v262, 4294901760
    %264 = vmatmul.mubr.f32.gmra.mrb[0].mxu0 %v263
    %v265 = vpop.f32.mrb[0].mxu0
    %v266 = vadd.f32 %v139, %v265
    %v267 = vpop.f32.mrb[0].mxu0
    %268 = vmatprep.mubr.f32.mxu0 0.0
    %v269 = vand.u32 %v172, 4294901760
    %v270 = vsub.f32 %v172, %v269
    %v271 = vand.u32 %v270, 4294901760
    %v272 = vsub.f32 %v270, %v271
    %v273 = vand.u32 %v272, 4294901760
    %274 = vmatmul.mubr.f32.gmra.mrb[0].mxu0 %v273
    %v275 = vpop.f32.mrb[0].mxu0
    %v276 = vadd.f32 %v143, %v275
    %v277 = vpop.f32.mrb[0].mxu0
    %278 = vmatprep.mubr.f32.mxu0 0.0
    %v279 = vand.u32 %v174, 4294901760
    %v280 = vsub.f32 %v174, %v279
    %v281 = vand.u32 %v280, 4294901760
    %v282 = vsub.f32 %v280, %v281
    %v283 = vand.u32 %v282, 4294901760
    %284 = vmatmul.mubr.f32.gmra.mrb[0].mxu0 %v283
    %v285 = vpop.f32.mrb[0].mxu0
    %v286 = vadd.f32 %v147, %v285
    %v287 = vpop.f32.mrb[0].mxu0
    %288 = vmatprep.mubr.f32.mxu0 0.0
    %v289 = vand.u32 %v176, 4294901760
    %v290 = vsub.f32 %v176, %v289
    %v291 = vand.u32 %v290, 4294901760
    %v292 = vsub.f32 %v290, %v291
    %v293 = vand.u32 %v292, 4294901760
    %294 = vmatmul.mubr.f32.gmra.mrb[0].mxu0 %v293
    %v295 = vpop.f32.mrb[0].mxu0
    %v296 = vadd.f32 %v151, %v295
    %v297 = vpop.f32.mrb[0].mxu0
    %298 = vmatprep.mubr.f32.mxu0 0.0
    %v299 = vand.u32 %v178, 4294901760
    %v300 = vsub.f32 %v178, %v299
    %v301 = vand.u32 %v300, 4294901760
    %v302 = vsub.f32 %v300, %v301
    %v303 = vand.u32 %v302, 4294901760
    %304 = vmatmul.mubr.f32.gmra.mrb[0].mxu0 %v303
    %v305 = vpop.f32.mrb[0].mxu0
    %v306 = vadd.f32 %v155, %v305
    %v307 = vpop.f32.mrb[0].mxu0
    %308 = vmatprep.mubr.f32.mxu0 0.0
    %v309 = vand.u32 %v180, 4294901760
    %v310 = vsub.f32 %v180, %v309
    %v311 = vand.u32 %v310, 4294901760
    %v312 = vsub.f32 %v310, %v311
    %v313 = vand.u32 %v312, 4294901760
    %314 = vmatmul.mubr.f32.gmra.mrb[0].mxu0 %v313
    %v315 = vpop.f32.mrb[0].mxu0
    %v316 = vadd.f32 %v159, %v315
    %v317 = vpop.f32.mrb[0].mxu0
    %318 = vmatprep.mubr.f32.mxu0 0.0
    %v319 = vand.u32 %v182, 4294901760
    %v320 = vsub.f32 %v182, %v319
    %v321 = vand.u32 %v320, 4294901760
    %v322 = vsub.f32 %v320, %v321
    %v323 = vand.u32 %v322, 4294901760
    %324 = vmatmul.mubr.f32.gmra.mrb[0].mxu0 %v323
    %v325 = vpop.f32.mrb[0].mxu0
    %v326 = vadd.f32 %v163, %v325
    %v327 = vpop.f32.mrb[0].mxu0
    %328 = vmatprep.mubr.f32.mxu0 0.0
    %v329 = vand.u32 %v184, 4294901760
    %v330 = vsub.f32 %v184, %v329
    %v331 = vand.u32 %v330, 4294901760
    %v332 = vsub.f32 %v330, %v331
    %v333 = vand.u32 %v332, 4294901760
    %334 = vmatmul.mubr.f32.gmra.mrb[0].mxu0 %v333
    %v335 = vpop.f32.mrb[0].mxu0
    %v336 = vadd.f32 %v167, %v335
    %v337 = vpop.f32.mrb[0].mxu0
    %338 = vdwg.mxu0
    %339 = vmatprep.subr.mxu0 0.0
    %v340 = vand.u32 %v129, 4294901760
    %v341 = vsub.f32 %v129, %v340
    %v342 = vand.u32 %v341, 4294901760
    %v343 = vsub.f32 %v341, %v342
    %v344 = vand.u32 %v343, 4294901760
    %345 = vmatpush1.msra.mxu0 %v344
    %346 = vmatprep.subr.mxu0 0.0
    %v347 = vand.u32 %v130, 4294901760
    %v348 = vsub.f32 %v130, %v347
    %v349 = vand.u32 %v348, 4294901760
    %v350 = vsub.f32 %v348, %v349
    %v351 = vand.u32 %v350, 4294901760
    %352 = vmatpush1.msra.mxu0 %v351
    %353 = vmatprep.subr.mxu0 0.0
    %v354 = vand.u32 %v131, 4294901760
    %v355 = vsub.f32 %v131, %v354
    %v356 = vand.u32 %v355, 4294901760
    %v357 = vsub.f32 %v355, %v356
    %v358 = vand.u32 %v357, 4294901760
    %359 = vmatpush1.msra.mxu0 %v358
    %360 = vmatprep.subr.mxu0 0.0
    %v361 = vand.u32 %v132, 4294901760
    %v362 = vsub.f32 %v132, %v361
    %v363 = vand.u32 %v362, 4294901760
    %v364 = vsub.f32 %v362, %v363
    %v365 = vand.u32 %v364, 4294901760
    %366 = vmatpush1.msra.mxu0 %v365
    %367 = vmatprep.subr.mxu0 0.0
    %v368 = vand.u32 %v133, 4294901760
    %v369 = vsub.f32 %v133, %v368
    %v370 = vand.u32 %v369, 4294901760
    %v371 = vsub.f32 %v369, %v370
    %v372 = vand.u32 %v371, 4294901760
    %373 = vmatpush1.msra.mxu0 %v372
    %374 = vmatprep.subr.mxu0 0.0
    %v375 = vand.u32 %v134, 4294901760
    %v376 = vsub.f32 %v134, %v375
    %v377 = vand.u32 %v376, 4294901760
    %v378 = vsub.f32 %v376, %v377
    %v379 = vand.u32 %v378, 4294901760
    %380 = vmatpush1.msra.mxu0 %v379
    %381 = vmatprep.subr.mxu0 0.0
    %v382 = vand.u32 %v135, 4294901760
    %v383 = vsub.f32 %v135, %v382
    %v384 = vand.u32 %v383, 4294901760
    %v385 = vsub.f32 %v383, %v384
    %v386 = vand.u32 %v385, 4294901760
    %387 = vmatpush1.msra.mxu0 %v386
    %388 = vmatprep.subr.mxu0 0.0
    %v389 = vand.u32 %v136, 4294901760
    %v390 = vsub.f32 %v136, %v389
    %v391 = vand.u32 %v390, 4294901760
    %v392 = vsub.f32 %v390, %v391
    %v393 = vand.u32 %v392, 4294901760
    %394 = vmatpush1.msra.mxu0 %v393
    %395 = vmatprep.subr.mxu0 0.0
    %396 = vmatpush1.msra.mxu0 0.0
    %397 = vmatprep.subr.mxu0 0.0
    %398 = vmatpush1.msra.mxu0 0.0
    %399 = vmatprep.subr.mxu0 0.0
    %400 = vmatpush1.msra.mxu0 0.0
    %401 = vmatprep.subr.mxu0 0.0
    %402 = vmatpush1.msra.mxu0 0.0
    %403 = vmatprep.subr.mxu0 0.0
    %404 = vmatpush1.msra.mxu0 0.0
    %405 = vmatprep.subr.mxu0 0.0
    %406 = vmatpush1.msra.mxu0 0.0
    %407 = vmatprep.subr.mxu0 0.0
    %408 = vmatpush1.msra.mxu0 0.0
    %409 = vmatprep.subr.mxu0 0.0
    %410 = vmatpush1.msra.mxu0 0.0
    %411 = vmatprep.subr.mxu0 0.0
    %412 = vmatpush1.msra.mxu0 0.0
    %413 = vmatprep.subr.mxu0 0.0
    %414 = vmatpush1.msra.mxu0 0.0
    %415 = vmatprep.subr.mxu0 0.0
    %416 = vmatpush1.msra.mxu0 0.0
    %417 = vmatprep.subr.mxu0 0.0
    %418 = vmatpush1.msra.mxu0 0.0
    %419 = vmatprep.subr.mxu0 0.0
    %420 = vmatpush1.msra.mxu0 0.0
    %421 = vmatprep.subr.mxu0 0.0
    %422 = vmatpush1.msra.mxu0 0.0
    %423 = vmatprep.subr.mxu0 0.0
    %424 = vmatpush1.msra.mxu0 0.0
    %425 = vmatprep.subr.mxu0 0.0
    %426 = vmatpush1.msra.mxu0 0.0
    %427 = vmatprep.subr.mxu0 0.0
    %428 = vmatpush1.msra.mxu0 0.0
    %429 = vmatprep.subr.mxu0 0.0
    %430 = vmatpush1.msra.mxu0 0.0
    %431 = vmatprep.subr.mxu0 0.0
    %432 = vmatpush1.msra.mxu0 0.0
    %433 = vmatprep.subr.mxu0 0.0
    %434 = vmatpush1.msra.mxu0 0.0
    %435 = vmatprep.subr.mxu0 0.0
    %436 = vmatpush1.msra.mxu0 0.0
    %437 = vmatprep.subr.mxu0 0.0
    %438 = vmatpush1.msra.mxu0 0.0
    %439 = vmatprep.subr.mxu0 0.0
    %440 = vmatpush1.msra.mxu0 0.0
    %441 = vmatprep.subr.mxu0 0.0
    %442 = vmatpush1.msra.mxu0 0.0
    %443 = vmatprep.mubr.f32.mxu0 0.0
    %v444 = vand.u32 %v170, 4294901760
    %445 = vmatmul.mubr.f32.gmra.mrb[0].mxu0 %v444
    %v446 = vpop.f32.mrb[0].mxu0
    %v447 = vadd.f32 %v266, %v446
    %v448 = vpop.f32.mrb[0].mxu0
    %449 = vmatprep.mubr.f32.mxu0 0.0
    %v450 = vand.u32 %v172, 4294901760
    %451 = vmatmul.mubr.f32.gmra.mrb[0].mxu0 %v450
    %v452 = vpop.f32.mrb[0].mxu0
    %v453 = vadd.f32 %v276, %v452
    %v454 = vpop.f32.mrb[0].mxu0
    %455 = vmatprep.mubr.f32.mxu0 0.0
    %v456 = vand.u32 %v174, 4294901760
    %457 = vmatmul.mubr.f32.gmra.mrb[0].mxu0 %v456
    %v458 = vpop.f32.mrb[0].mxu0
    %v459 = vadd.f32 %v286, %v458
    %v460 = vpop.f32.mrb[0].mxu0
    %461 = vmatprep.mubr.f32.mxu0 0.0
    %v462 = vand.u32 %v176, 4294901760
    %463 = vmatmul.mubr.f32.gmra.mrb[0].mxu0 %v462
    %v464 = vpop.f32.mrb[0].mxu0
    %v465 = vadd.f32 %v296, %v464
    %v466 = vpop.f32.mrb[0].mxu0
    %467 = vmatprep.mubr.f32.mxu0 0.0
    %v468 = vand.u32 %v178, 4294901760
    %469 = vmatmul.mubr.f32.gmra.mrb[0].mxu0 %v468
    %v470 = vpop.f32.mrb[0].mxu0
    %v471 = vadd.f32 %v306, %v470
    %v472 = vpop.f32.mrb[0].mxu0
    %473 = vmatprep.mubr.f32.mxu0 0.0
    %v474 = vand.u32 %v180, 4294901760
    %475 = vmatmul.mubr.f32.gmra.mrb[0].mxu0 %v474
    %v476 = vpop.f32.mrb[0].mxu0
    %v477 = vadd.f32 %v316, %v476
    %v478 = vpop.f32.mrb[0].mxu0
    %479 = vmatprep.mubr.f32.mxu0 0.0
    %v480 = vand.u32 %v182, 4294901760
    %481 = vmatmul.mubr.f32.gmra.mrb[0].mxu0 %v480
    %v482 = vpop.f32.mrb[0].mxu0
    %v483 = vadd.f32 %v326, %v482
    %v484 = vpop.f32.mrb[0].mxu0
    %485 = vmatprep.mubr.f32.mxu0 0.0
    %v486 = vand.u32 %v184, 4294901760
    %487 = vmatmul.mubr.f32.gmra.mrb[0].mxu0 %v486
    %v488 = vpop.f32.mrb[0].mxu0
    %v489 = vadd.f32 %v336, %v488
    %v490 = vpop.f32.mrb[0].mxu0
    %491 = vdwg.mxu0
    %492 = vmatprep.subr.mxu0 0.0
    %v493 = vand.u32 %v129, 4294901760
    %v494 = vsub.f32 %v129, %v493
    %495 = vmatpush1.msra.mxu0 %v494
    %496 = vmatprep.subr.mxu0 0.0
    %v497 = vand.u32 %v130, 4294901760
    %v498 = vsub.f32 %v130, %v497
    %499 = vmatpush1.msra.mxu0 %v498
    %500 = vmatprep.subr.mxu0 0.0
    %v501 = vand.u32 %v131, 4294901760
    %v502 = vsub.f32 %v131, %v501
    %503 = vmatpush1.msra.mxu0 %v502
    %504 = vmatprep.subr.mxu0 0.0
    %v505 = vand.u32 %v132, 4294901760
    %v506 = vsub.f32 %v132, %v505
    %507 = vmatpush1.msra.mxu0 %v506
    %508 = vmatprep.subr.mxu0 0.0
    %v509 = vand.u32 %v133, 4294901760
    %v510 = vsub.f32 %v133, %v509
    %511 = vmatpush1.msra.mxu0 %v510
    %512 = vmatprep.subr.mxu0 0.0
    %v513 = vand.u32 %v134, 4294901760
    %v514 = vsub.f32 %v134, %v513
    %515 = vmatpush1.msra.mxu0 %v514
    %516 = vmatprep.subr.mxu0 0.0
    %v517 = vand.u32 %v135, 4294901760
    %v518 = vsub.f32 %v135, %v517
    %519 = vmatpush1.msra.mxu0 %v518
    %520 = vmatprep.subr.mxu0 0.0
    %v521 = vand.u32 %v136, 4294901760
    %v522 = vsub.f32 %v136, %v521
    %523 = vmatpush1.msra.mxu0 %v522
    %524 = vmatprep.subr.mxu0 0.0
    %525 = vmatpush1.msra.mxu0 0.0
    %526 = vmatprep.subr.mxu0 0.0
    %527 = vmatpush1.msra.mxu0 0.0
    %528 = vmatprep.subr.mxu0 0.0
    %529 = vmatpush1.msra.mxu0 0.0
    %530 = vmatprep.subr.mxu0 0.0
    %531 = vmatpush1.msra.mxu0 0.0
    %532 = vmatprep.subr.mxu0 0.0
    %533 = vmatpush1.msra.mxu0 0.0
    %534 = vmatprep.subr.mxu0 0.0
    %535 = vmatpush1.msra.mxu0 0.0
    %536 = vmatprep.subr.mxu0 0.0
    %537 = vmatpush1.msra.mxu0 0.0
    %538 = vmatprep.subr.mxu0 0.0
    %539 = vmatpush1.msra.mxu0 0.0
    %540 = vmatprep.subr.mxu0 0.0
    %541 = vmatpush1.msra.mxu0 0.0
    %542 = vmatprep.subr.mxu0 0.0
    %543 = vmatpush1.msra.mxu0 0.0
    %544 = vmatprep.subr.mxu0 0.0
    %545 = vmatpush1.msra.mxu0 0.0
    %546 = vmatprep.subr.mxu0 0.0
    %547 = vmatpush1.msra.mxu0 0.0
    %548 = vmatprep.subr.mxu0 0.0
    %549 = vmatpush1.msra.mxu0 0.0
    %550 = vmatprep.subr.mxu0 0.0
    %551 = vmatpush1.msra.mxu0 0.0
    %552 = vmatprep.subr.mxu0 0.0
    %553 = vmatpush1.msra.mxu0 0.0
    %554 = vmatprep.subr.mxu0 0.0
    %555 = vmatpush1.msra.mxu0 0.0
    %556 = vmatprep.subr.mxu0 0.0
    %557 = vmatpush1.msra.mxu0 0.0
    %558 = vmatprep.subr.mxu0 0.0
    %559 = vmatpush1.msra.mxu0 0.0
    %560 = vmatprep.subr.mxu0 0.0
    %561 = vmatpush1.msra.mxu0 0.0
    %562 = vmatprep.subr.mxu0 0.0
    %563 = vmatpush1.msra.mxu0 0.0
    %564 = vmatprep.subr.mxu0 0.0
    %565 = vmatpush1.msra.mxu0 0.0
    %566 = vmatprep.subr.mxu0 0.0
    %567 = vmatpush1.msra.mxu0 0.0
    %568 = vmatprep.subr.mxu0 0.0
    %569 = vmatpush1.msra.mxu0 0.0
    %570 = vmatprep.subr.mxu0 0.0
    %571 = vmatpush1.msra.mxu0 0.0
    %572 = vmatprep.mubr.f32.mxu0 0.0
    %v573 = vand.u32 %v170, 4294901760
    %v574 = vsub.f32 %v170, %v573
    %575 = vmatmul.mubr.f32.gmra.mrb[0].mxu0 %v574
    %v576 = vpop.f32.mrb[0].mxu0
    %v577 = vadd.f32 %v447, %v576
    %v578 = vpop.f32.mrb[0].mxu0
    %579 = vmatprep.mubr.f32.mxu0 0.0
    %v580 = vand.u32 %v172, 4294901760
    %v581 = vsub.f32 %v172, %v580
    %582 = vmatmul.mubr.f32.gmra.mrb[0].mxu0 %v581
    %v583 = vpop.f32.mrb[0].mxu0
    %v584 = vadd.f32 %v453, %v583
    %v585 = vpop.f32.mrb[0].mxu0
    %586 = vmatprep.mubr.f32.mxu0 0.0
    %v587 = vand.u32 %v174, 4294901760
    %v588 = vsub.f32 %v174, %v587
    %589 = vmatmul.mubr.f32.gmra.mrb[0].mxu0 %v588
    %v590 = vpop.f32.mrb[0].mxu0
    %v591 = vadd.f32 %v459, %v590
    %v592 = vpop.f32.mrb[0].mxu0
    %593 = vmatprep.mubr.f32.mxu0 0.0
    %v594 = vand.u32 %v176, 4294901760
    %v595 = vsub.f32 %v176, %v594
    %596 = vmatmul.mubr.f32.gmra.mrb[0].mxu0 %v595
    %v597 = vpop.f32.mrb[0].mxu0
    %v598 = vadd.f32 %v465, %v597
    %v599 = vpop.f32.mrb[0].mxu0
    %600 = vmatprep.mubr.f32.mxu0 0.0
    %v601 = vand.u32 %v178, 4294901760
    %v602 = vsub.f32 %v178, %v601
    %603 = vmatmul.mubr.f32.gmra.mrb[0].mxu0 %v602
    %v604 = vpop.f32.mrb[0].mxu0
    %v605 = vadd.f32 %v471, %v604
    %v606 = vpop.f32.mrb[0].mxu0
    %607 = vmatprep.mubr.f32.mxu0 0.0
    %v608 = vand.u32 %v180, 4294901760
    %v609 = vsub.f32 %v180, %v608
    %610 = vmatmul.mubr.f32.gmra.mrb[0].mxu0 %v609
    %v611 = vpop.f32.mrb[0].mxu0
    %v612 = vadd.f32 %v477, %v611
    %v613 = vpop.f32.mrb[0].mxu0
    %614 = vmatprep.mubr.f32.mxu0 0.0
    %v615 = vand.u32 %v182, 4294901760
    %v616 = vsub.f32 %v182, %v615
    %617 = vmatmul.mubr.f32.gmra.mrb[0].mxu0 %v616
    %v618 = vpop.f32.mrb[0].mxu0
    %v619 = vadd.f32 %v483, %v618
    %v620 = vpop.f32.mrb[0].mxu0
    %621 = vmatprep.mubr.f32.mxu0 0.0
    %v622 = vand.u32 %v184, 4294901760
    %v623 = vsub.f32 %v184, %v622
    %624 = vmatmul.mubr.f32.gmra.mrb[0].mxu0 %v623
    %v625 = vpop.f32.mrb[0].mxu0
    %v626 = vadd.f32 %v489, %v625
    %v627 = vpop.f32.mrb[0].mxu0
    %628 = vdwg.mxu0
    %629 = vmatprep.subr.mxu0 0.0
    %v630 = vand.u32 %v129, 4294901760
    %631 = vmatpush1.msra.mxu0 %v630
    %632 = vmatprep.subr.mxu0 0.0
    %v633 = vand.u32 %v130, 4294901760
    %634 = vmatpush1.msra.mxu0 %v633
    %635 = vmatprep.subr.mxu0 0.0
    %v636 = vand.u32 %v131, 4294901760
    %637 = vmatpush1.msra.mxu0 %v636
    %638 = vmatprep.subr.mxu0 0.0
    %v639 = vand.u32 %v132, 4294901760
    %640 = vmatpush1.msra.mxu0 %v639
    %641 = vmatprep.subr.mxu0 0.0
    %v642 = vand.u32 %v133, 4294901760
    %643 = vmatpush1.msra.mxu0 %v642
    %644 = vmatprep.subr.mxu0 0.0
    %v645 = vand.u32 %v134, 4294901760
    %646 = vmatpush1.msra.mxu0 %v645
    %647 = vmatprep.subr.mxu0 0.0
    %v648 = vand.u32 %v135, 4294901760
    %649 = vmatpush1.msra.mxu0 %v648
    %650 = vmatprep.subr.mxu0 0.0
    %v651 = vand.u32 %v136, 4294901760
    %652 = vmatpush1.msra.mxu0 %v651
    %653 = vmatprep.subr.mxu0 0.0
    %654 = vmatpush1.msra.mxu0 0.0
    %655 = vmatprep.subr.mxu0 0.0
    %656 = vmatpush1.msra.mxu0 0.0
    %657 = vmatprep.subr.mxu0 0.0
    %658 = vmatpush1.msra.mxu0 0.0
    %659 = vmatprep.subr.mxu0 0.0
    %660 = vmatpush1.msra.mxu0 0.0
    %661 = vmatprep.subr.mxu0 0.0
    %662 = vmatpush1.msra.mxu0 0.0
    %663 = vmatprep.subr.mxu0 0.0
    %664 = vmatpush1.msra.mxu0 0.0
    %665 = vmatprep.subr.mxu0 0.0
    %666 = vmatpush1.msra.mxu0 0.0
    %667 = vmatprep.subr.mxu0 0.0
    %668 = vmatpush1.msra.mxu0 0.0
    %669 = vmatprep.subr.mxu0 0.0
    %670 = vmatpush1.msra.mxu0 0.0
    %671 = vmatprep.subr.mxu0 0.0
    %672 = vmatpush1.msra.mxu0 0.0
    %673 = vmatprep.subr.mxu0 0.0
    %674 = vmatpush1.msra.mxu0 0.0
    %675 = vmatprep.subr.mxu0 0.0
    %676 = vmatpush1.msra.mxu0 0.0
    %677 = vmatprep.subr.mxu0 0.0
    %678 = vmatpush1.msra.mxu0 0.0
    %679 = vmatprep.subr.mxu0 0.0
    %680 = vmatpush1.msra.mxu0 0.0
    %681 = vmatprep.subr.mxu0 0.0
    %682 = vmatpush1.msra.mxu0 0.0
    %683 = vmatprep.subr.mxu0 0.0
    %684 = vmatpush1.msra.mxu0 0.0
    %685 = vmatprep.subr.mxu0 0.0
    %686 = vmatpush1.msra.mxu0 0.0
    %687 = vmatprep.subr.mxu0 0.0
    %688 = vmatpush1.msra.mxu0 0.0
    %689 = vmatprep.subr.mxu0 0.0
    %690 = vmatpush1.msra.mxu0 0.0
    %691 = vmatprep.subr.mxu0 0.0
    %692 = vmatpush1.msra.mxu0 0.0
    %693 = vmatprep.subr.mxu0 0.0
    %694 = vmatpush1.msra.mxu0 0.0
    %695 = vmatprep.subr.mxu0 0.0
    %696 = vmatpush1.msra.mxu0 0.0
    %697 = vmatprep.subr.mxu0 0.0
    %698 = vmatpush1.msra.mxu0 0.0
    %699 = vmatprep.subr.mxu0 0.0
    %700 = vmatpush1.msra.mxu0 0.0
    %701 = vmatprep.mubr.f32.mxu0 0.0
    %v702 = vand.u32 %v170, 4294901760
    %v703 = vsub.f32 %v170, %v702
    %v704 = vand.u32 %v703, 4294901760
    %705 = vmatmul.mubr.f32.gmra.mrb[0].mxu0 %v704
    %v706 = vpop.f32.mrb[0].mxu0
    %v707 = vadd.f32 %v577, %v706
    %v708 = vpop.f32.mrb[0].mxu0
    %709 = vmatprep.mubr.f32.mxu0 0.0
    %v710 = vand.u32 %v172, 4294901760
    %v711 = vsub.f32 %v172, %v710
    %v712 = vand.u32 %v711, 4294901760
    %713 = vmatmul.mubr.f32.gmra.mrb[0].mxu0 %v712
    %v714 = vpop.f32.mrb[0].mxu0
    %v715 = vadd.f32 %v584, %v714
    %v716 = vpop.f32.mrb[0].mxu0
    %717 = vmatprep.mubr.f32.mxu0 0.0
    %v718 = vand.u32 %v174, 4294901760
    %v719 = vsub.f32 %v174, %v718
    %v720 = vand.u32 %v719, 4294901760
    %721 = vmatmul.mubr.f32.gmra.mrb[0].mxu0 %v720
    %v722 = vpop.f32.mrb[0].mxu0
    %v723 = vadd.f32 %v591, %v722
    %v724 = vpop.f32.mrb[0].mxu0
    %725 = vmatprep.mubr.f32.mxu0 0.0
    %v726 = vand.u32 %v176, 4294901760
    %v727 = vsub.f32 %v176, %v726
    %v728 = vand.u32 %v727, 4294901760
    %729 = vmatmul.mubr.f32.gmra.mrb[0].mxu0 %v728
    %v730 = vpop.f32.mrb[0].mxu0
    %v731 = vadd.f32 %v598, %v730
    %v732 = vpop.f32.mrb[0].mxu0
    %733 = vmatprep.mubr.f32.mxu0 0.0
    %v734 = vand.u32 %v178, 4294901760
    %v735 = vsub.f32 %v178, %v734
    %v736 = vand.u32 %v735, 4294901760
    %737 = vmatmul.mubr.f32.gmra.mrb[0].mxu0 %v736
    %v738 = vpop.f32.mrb[0].mxu0
    %v739 = vadd.f32 %v605, %v738
    %v740 = vpop.f32.mrb[0].mxu0
    %741 = vmatprep.mubr.f32.mxu0 0.0
    %v742 = vand.u32 %v180, 4294901760
    %v743 = vsub.f32 %v180, %v742
    %v744 = vand.u32 %v743, 4294901760
    %745 = vmatmul.mubr.f32.gmra.mrb[0].mxu0 %v744
    %v746 = vpop.f32.mrb[0].mxu0
    %v747 = vadd.f32 %v612, %v746
    %v748 = vpop.f32.mrb[0].mxu0
    %749 = vmatprep.mubr.f32.mxu0 0.0
    %v750 = vand.u32 %v182, 4294901760
    %v751 = vsub.f32 %v182, %v750
    %v752 = vand.u32 %v751, 4294901760
    %753 = vmatmul.mubr.f32.gmra.mrb[0].mxu0 %v752
    %v754 = vpop.f32.mrb[0].mxu0
    %v755 = vadd.f32 %v619, %v754
    %v756 = vpop.f32.mrb[0].mxu0
    %757 = vmatprep.mubr.f32.mxu0 0.0
    %v758 = vand.u32 %v184, 4294901760
    %v759 = vsub.f32 %v184, %v758
    %v760 = vand.u32 %v759, 4294901760
    %761 = vmatmul.mubr.f32.gmra.mrb[0].mxu0 %v760
    %v762 = vpop.f32.mrb[0].mxu0
    %v763 = vadd.f32 %v626, %v762
    %v764 = vpop.f32.mrb[0].mxu0
    %765 = vdwg.mxu0
    %766 = vmatprep.subr.mxu0 0.0
    %v767 = vand.u32 %v129, 4294901760
    %v768 = vsub.f32 %v129, %v767
    %v769 = vand.u32 %v768, 4294901760
    %770 = vmatpush1.msra.mxu0 %v769
    %771 = vmatprep.subr.mxu0 0.0
    %v772 = vand.u32 %v130, 4294901760
    %v773 = vsub.f32 %v130, %v772
    %v774 = vand.u32 %v773, 4294901760
    %775 = vmatpush1.msra.mxu0 %v774
    %776 = vmatprep.subr.mxu0 0.0
    %v777 = vand.u32 %v131, 4294901760
    %v778 = vsub.f32 %v131, %v777
    %v779 = vand.u32 %v778, 4294901760
    %780 = vmatpush1.msra.mxu0 %v779
    %781 = vmatprep.subr.mxu0 0.0
    %v782 = vand.u32 %v132, 4294901760
    %v783 = vsub.f32 %v132, %v782
    %v784 = vand.u32 %v783, 4294901760
    %785 = vmatpush1.msra.mxu0 %v784
    %786 = vmatprep.subr.mxu0 0.0
    %v787 = vand.u32 %v133, 4294901760
    %v788 = vsub.f32 %v133, %v787
    %v789 = vand.u32 %v788, 4294901760
    %790 = vmatpush1.msra.mxu0 %v789
    %791 = vmatprep.subr.mxu0 0.0
    %v792 = vand.u32 %v134, 4294901760
    %v793 = vsub.f32 %v134, %v792
    %v794 = vand.u32 %v793, 4294901760
    %795 = vmatpush1.msra.mxu0 %v794
    %796 = vmatprep.subr.mxu0 0.0
    %v797 = vand.u32 %v135, 4294901760
    %v798 = vsub.f32 %v135, %v797
    %v799 = vand.u32 %v798, 4294901760
    %800 = vmatpush1.msra.mxu0 %v799
    %801 = vmatprep.subr.mxu0 0.0
    %v802 = vand.u32 %v136, 4294901760
    %v803 = vsub.f32 %v136, %v802
    %v804 = vand.u32 %v803, 4294901760
    %805 = vmatpush1.msra.mxu0 %v804
    %806 = vmatprep.subr.mxu0 0.0
    %807 = vmatpush1.msra.mxu0 0.0
    %808 = vmatprep.subr.mxu0 0.0
    %809 = vmatpush1.msra.mxu0 0.0
    %810 = vmatprep.subr.mxu0 0.0
    %811 = vmatpush1.msra.mxu0 0.0
    %812 = vmatprep.subr.mxu0 0.0
    %813 = vmatpush1.msra.mxu0 0.0
    %814 = vmatprep.subr.mxu0 0.0
    %815 = vmatpush1.msra.mxu0 0.0
    %816 = vmatprep.subr.mxu0 0.0
    %817 = vmatpush1.msra.mxu0 0.0
    %818 = vmatprep.subr.mxu0 0.0
    %819 = vmatpush1.msra.mxu0 0.0
    %820 = vmatprep.subr.mxu0 0.0
    %821 = vmatpush1.msra.mxu0 0.0
    %822 = vmatprep.subr.mxu0 0.0
    %823 = vmatpush1.msra.mxu0 0.0
    %824 = vmatprep.subr.mxu0 0.0
    %825 = vmatpush1.msra.mxu0 0.0
    %826 = vmatprep.subr.mxu0 0.0
    %827 = vmatpush1.msra.mxu0 0.0
    %828 = vmatprep.subr.mxu0 0.0
    %829 = vmatpush1.msra.mxu0 0.0
    %830 = vmatprep.subr.mxu0 0.0
    %831 = vmatpush1.msra.mxu0 0.0
    %832 = vmatprep.subr.mxu0 0.0
    %833 = vmatpush1.msra.mxu0 0.0
    %834 = vmatprep.subr.mxu0 0.0
    %835 = vmatpush1.msra.mxu0 0.0
    %836 = vmatprep.subr.mxu0 0.0
    %837 = vmatpush1.msra.mxu0 0.0
    %838 = vmatprep.subr.mxu0 0.0
    %839 = vmatpush1.msra.mxu0 0.0
    %840 = vmatprep.subr.mxu0 0.0
    %841 = vmatpush1.msra.mxu0 0.0
    %842 = vmatprep.subr.mxu0 0.0
    %843 = vmatpush1.msra.mxu0 0.0
    %844 = vmatprep.subr.mxu0 0.0
    %845 = vmatpush1.msra.mxu0 0.0
    %846 = vmatprep.subr.mxu0 0.0
    %847 = vmatpush1.msra.mxu0 0.0
    %848 = vmatprep.subr.mxu0 0.0
    %849 = vmatpush1.msra.mxu0 0.0
    %850 = vmatprep.subr.mxu0 0.0
    %851 = vmatpush1.msra.mxu0 0.0
    %852 = vmatprep.subr.mxu0 0.0
    %853 = vmatpush1.msra.mxu0 0.0
    %854 = vmatprep.mubr.f32.mxu0 0.0
    %v855 = vand.u32 %v170, 4294901760
    %856 = vmatmul.mubr.f32.gmra.mrb[0].mxu0 %v855
    %v857 = vpop.f32.mrb[0].mxu0
    %v858 = vadd.f32 %v707, %v857
    %v859 = vpop.f32.mrb[0].mxu0
    %860 = vmatprep.mubr.f32.mxu0 0.0
    %v861 = vand.u32 %v172, 4294901760
    %862 = vmatmul.mubr.f32.gmra.mrb[0].mxu0 %v861
    %v863 = vpop.f32.mrb[0].mxu0
    %v864 = vadd.f32 %v715, %v863
    %v865 = vpop.f32.mrb[0].mxu0
    %866 = vmatprep.mubr.f32.mxu0 0.0
    %v867 = vand.u32 %v174, 4294901760
    %868 = vmatmul.mubr.f32.gmra.mrb[0].mxu0 %v867
    %v869 = vpop.f32.mrb[0].mxu0
    %v870 = vadd.f32 %v723, %v869
    %v871 = vpop.f32.mrb[0].mxu0
    %872 = vmatprep.mubr.f32.mxu0 0.0
    %v873 = vand.u32 %v176, 4294901760
    %874 = vmatmul.mubr.f32.gmra.mrb[0].mxu0 %v873
    %v875 = vpop.f32.mrb[0].mxu0
    %v876 = vadd.f32 %v731, %v875
    %v877 = vpop.f32.mrb[0].mxu0
    %878 = vmatprep.mubr.f32.mxu0 0.0
    %v879 = vand.u32 %v178, 4294901760
    %880 = vmatmul.mubr.f32.gmra.mrb[0].mxu0 %v879
    %v881 = vpop.f32.mrb[0].mxu0
    %v882 = vadd.f32 %v739, %v881
    %v883 = vpop.f32.mrb[0].mxu0
    %884 = vmatprep.mubr.f32.mxu0 0.0
    %v885 = vand.u32 %v180, 4294901760
    %886 = vmatmul.mubr.f32.gmra.mrb[0].mxu0 %v885
    %v887 = vpop.f32.mrb[0].mxu0
    %v888 = vadd.f32 %v747, %v887
    %v889 = vpop.f32.mrb[0].mxu0
    %890 = vmatprep.mubr.f32.mxu0 0.0
    %v891 = vand.u32 %v182, 4294901760
    %892 = vmatmul.mubr.f32.gmra.mrb[0].mxu0 %v891
    %v893 = vpop.f32.mrb[0].mxu0
    %v894 = vadd.f32 %v755, %v893
    %v895 = vpop.f32.mrb[0].mxu0
    %896 = vmatprep.mubr.f32.mxu0 0.0
    %v897 = vand.u32 %v184, 4294901760
    %898 = vmatmul.mubr.f32.gmra.mrb[0].mxu0 %v897
    %v899 = vpop.f32.mrb[0].mxu0
    %v900 = vadd.f32 %v763, %v899
    %v901 = vpop.f32.mrb[0].mxu0
    %902 = vdwg.mxu0
    %903 = vmatprep.subr.mxu0 0.0
    %v904 = vand.u32 %v129, 4294901760
    %905 = vmatpush1.msra.mxu0 %v904
    %906 = vmatprep.subr.mxu0 0.0
    %v907 = vand.u32 %v130, 4294901760
    %908 = vmatpush1.msra.mxu0 %v907
    %909 = vmatprep.subr.mxu0 0.0
    %v910 = vand.u32 %v131, 4294901760
    %911 = vmatpush1.msra.mxu0 %v910
    %912 = vmatprep.subr.mxu0 0.0
    %v913 = vand.u32 %v132, 4294901760
    %914 = vmatpush1.msra.mxu0 %v913
    %915 = vmatprep.subr.mxu0 0.0
    %v916 = vand.u32 %v133, 4294901760
    %917 = vmatpush1.msra.mxu0 %v916
    %918 = vmatprep.subr.mxu0 0.0
    %v919 = vand.u32 %v134, 4294901760
    %920 = vmatpush1.msra.mxu0 %v919
    %921 = vmatprep.subr.mxu0 0.0
    %v922 = vand.u32 %v135, 4294901760
    %923 = vmatpush1.msra.mxu0 %v922
    %924 = vmatprep.subr.mxu0 0.0
    %v925 = vand.u32 %v136, 4294901760
    %926 = vmatpush1.msra.mxu0 %v925
    %927 = vmatprep.subr.mxu0 0.0
    %928 = vmatpush1.msra.mxu0 0.0
    %929 = vmatprep.subr.mxu0 0.0
    %930 = vmatpush1.msra.mxu0 0.0
    %931 = vmatprep.subr.mxu0 0.0
    %932 = vmatpush1.msra.mxu0 0.0
    %933 = vmatprep.subr.mxu0 0.0
    %934 = vmatpush1.msra.mxu0 0.0
    %935 = vmatprep.subr.mxu0 0.0
    %936 = vmatpush1.msra.mxu0 0.0
    %937 = vmatprep.subr.mxu0 0.0
    %938 = vmatpush1.msra.mxu0 0.0
    %939 = vmatprep.subr.mxu0 0.0
    %940 = vmatpush1.msra.mxu0 0.0
    %941 = vmatprep.subr.mxu0 0.0
    %942 = vmatpush1.msra.mxu0 0.0
    %943 = vmatprep.subr.mxu0 0.0
    %944 = vmatpush1.msra.mxu0 0.0
    %945 = vmatprep.subr.mxu0 0.0
    %946 = vmatpush1.msra.mxu0 0.0
    %947 = vmatprep.subr.mxu0 0.0
    %948 = vmatpush1.msra.mxu0 0.0
    %949 = vmatprep.subr.mxu0 0.0
    %950 = vmatpush1.msra.mxu0 0.0
    %951 = vmatprep.subr.mxu0 0.0
    %952 = vmatpush1.msra.mxu0 0.0
    %953 = vmatprep.subr.mxu0 0.0
    %954 = vmatpush1.msra.mxu0 0.0
    %955 = vmatprep.subr.mxu0 0.0
    %956 = vmatpush1.msra.mxu0 0.0
    %957 = vmatprep.subr.mxu0 0.0
    %958 = vmatpush1.msra.mxu0 0.0
    %959 = vmatprep.subr.mxu0 0.0
    %960 = vmatpush1.msra.mxu0 0.0
    %961 = vmatprep.subr.mxu0 0.0
    %962 = vmatpush1.msra.mxu0 0.0
    %963 = vmatprep.subr.mxu0 0.0
    %964 = vmatpush1.msra.mxu0 0.0
    %965 = vmatprep.subr.mxu0 0.0
    %966 = vmatpush1.msra.mxu0 0.0
    %967 = vmatprep.subr.mxu0 0.0
    %968 = vmatpush1.msra.mxu0 0.0
    %969 = vmatprep.subr.mxu0 0.0
    %970 = vmatpush1.msra.mxu0 0.0
    %971 = vmatprep.subr.mxu0 0.0
    %972 = vmatpush1.msra.mxu0 0.0
    %973 = vmatprep.subr.mxu0 0.0
    %974 = vmatpush1.msra.mxu0 0.0
    %975 = vmatprep.mubr.f32.mxu0 0.0
    %v976 = vand.u32 %v170, 4294901760
    %977 = vmatmul.mubr.f32.gmra.mrb[0].mxu0 %v976
    %v978 = vpop.f32.mrb[0].mxu0
    %v979 = vadd.f32 %v858, %v978
    %v980 = vpop.f32.mrb[0].mxu0
    %981 = vmatprep.mubr.f32.mxu0 0.0
    %v982 = vand.u32 %v172, 4294901760
    %983 = vmatmul.mubr.f32.gmra.mrb[0].mxu0 %v982
    %v984 = vpop.f32.mrb[0].mxu0
    %v985 = vadd.f32 %v864, %v984
    %v986 = vpop.f32.mrb[0].mxu0
    %987 = vmatprep.mubr.f32.mxu0 0.0
    %v988 = vand.u32 %v174, 4294901760
    %989 = vmatmul.mubr.f32.gmra.mrb[0].mxu0 %v988
    %v990 = vpop.f32.mrb[0].mxu0
    %v991 = vadd.f32 %v870, %v990
    %v992 = vpop.f32.mrb[0].mxu0
    %993 = vmatprep.mubr.f32.mxu0 0.0
    %v994 = vand.u32 %v176, 4294901760
    %995 = vmatmul.mubr.f32.gmra.mrb[0].mxu0 %v994
    %v996 = vpop.f32.mrb[0].mxu0
    %v997 = vadd.f32 %v876, %v996
    %v998 = vpop.f32.mrb[0].mxu0
    %999 = vmatprep.mubr.f32.mxu0 0.0
    %v1000 = vand.u32 %v178, 4294901760
    %1001 = vmatmul.mubr.f32.gmra.mrb[0].mxu0 %v1000
    %v1002 = vpop.f32.mrb[0].mxu0
    %v1003 = vadd.f32 %v882, %v1002
    %v1004 = vpop.f32.mrb[0].mxu0
    %1005 = vmatprep.mubr.f32.mxu0 0.0
    %v1006 = vand.u32 %v180, 4294901760
    %1007 = vmatmul.mubr.f32.gmra.mrb[0].mxu0 %v1006
    %v1008 = vpop.f32.mrb[0].mxu0
    %v1009 = vadd.f32 %v888, %v1008
    %v1010 = vpop.f32.mrb[0].mxu0
    %1011 = vmatprep.mubr.f32.mxu0 0.0
    %v1012 = vand.u32 %v182, 4294901760
    %1013 = vmatmul.mubr.f32.gmra.mrb[0].mxu0 %v1012
    %v1014 = vpop.f32.mrb[0].mxu0
    %v1015 = vadd.f32 %v894, %v1014
    %v1016 = vpop.f32.mrb[0].mxu0
    %1017 = vmatprep.mubr.f32.mxu0 0.0
    %v1018 = vand.u32 %v184, 4294901760
    %1019 = vmatmul.mubr.f32.gmra.mrb[0].mxu0 %v1018
    %v1020 = vpop.f32.mrb[0].mxu0
    %v1021 = vadd.f32 %v900, %v1020
    %v1022 = vpop.f32.mrb[0].mxu0
    %1023 = vdwg.mxu0
    %v1024 = vtanh.pop %v979
    %v1025 = vtanh.pop %v985
    %v1026 = vtanh.pop %v991
    %v1027 = vtanh.pop %v997
    %v1028 = vtanh.pop %v1003
    %v1029 = vtanh.pop %v1009
    %v1030 = vtanh.pop %v1015
    %v1031 = vtanh.pop %v1021
    %1032 = vset.pattern.permute.xlu0 67
    %1033 = vperm.xlu0 %1032, %v26
    %v1034 = vpop.permute.xlu0 %1033
    %1036 = vset.pattern.permute.xlu0 67
    %1037 = vperm.xlu0 %1036, %v27
    %v1038 = vpop.permute.xlu0 %1037
    %1040 = vset.pattern.permute.xlu0 67
    %1041 = vperm.xlu0 %1040, %v28
    %v1042 = vpop.permute.xlu0 %1041
    %1044 = vset.pattern.permute.xlu0 67
    %1045 = vperm.xlu0 %1044, %v29
    %v1046 = vpop.permute.xlu0 %1045
    %1048 = vset.pattern.permute.xlu0 67
    %1049 = vperm.xlu0 %1048, %v30
    %v1050 = vpop.permute.xlu0 %1049
    %1052 = vset.pattern.permute.xlu0 67
    %1053 = vperm.xlu0 %1052, %v31
    %v1054 = vpop.permute.xlu0 %1053
    %1056 = vset.pattern.permute.xlu0 67
    %1057 = vperm.xlu0 %1056, %v32
    %v1058 = vpop.permute.xlu0 %1057
    %1060 = vset.pattern.permute.xlu0 67
    %1061 = vperm.xlu0 %1060, %v33
    %v1062 = vpop.permute.xlu0 %1061
    %v1064 = vmul.f32 %v1024, %v1034
    %v1065 = vmul.f32 %v1025, %v1038
    %v1066 = vmul.f32 %v1026, %v1042
    %v1067 = vmul.f32 %v1027, %v1046
    %v1068 = vmul.f32 %v1028, %v1050
    %v1069 = vmul.f32 %v1029, %v1054
    %v1070 = vmul.f32 %v1030, %v1058
    %v1071 = vmul.f32 %v1031, %v1062
    %v1072 = vadd.f32 %v1064, %v1065
    %v1073 = vadd.f32 %v1072, %v1066
    %v1074 = vadd.f32 %v1073, %v1067
    %v1075 = vadd.f32 %v1074, %v1068
    %v1076 = vadd.f32 %v1075, %v1069
    %v1077 = vadd.f32 %v1076, %v1070
    %v1078 = vadd.f32 %v1077, %v1071
    %v1079 = vrot.slane %v1078, 4
    %v1080 = vadd.f32 %v1078, %v1079
    %v1081 = vrot.slane %v1080, 2
    %v1082 = vadd.f32 %v1080, %v1081
    %v1083 = vrot.slane %v1082, 1
    %v1084 = vadd.f32 %v1082, %v1083
    %1086 = vset.pattern.permute.xlu0 68
    %1087 = vperm.xlu0 %1086, %v34
    %v1088 = vpop.permute.xlu0 %1087
    %v1090 = vadd.f32 %v1084, %v1088
    %1091 = vst [vmem:[%s2] sm:$0x1] %v1090
    // Predicated region
    $region14: #{nn_model_forward.1} parent=1 // pred_check
      _
    $region15: #{nn_model_forward.1} parent=1 // pred_check_branch
      %1093 = sbr.rel (0) target = $region17
    $region16: #{nn_model_forward.1} parent=1 // pred_region
      _
    $region17: #{nn_model_forward.1} parent=1 // pred_fallthru
      _
    // Predicated region
    $region18: #{nn_model_forward.1} parent=1 // pred_check
      _
    $region19: #{nn_model_forward.1} parent=1 // pred_check_branch
      %1095 = sbr.rel (0) target = $region21
    $region20: #{nn_model_forward.1} parent=1 // pred_region
      _
    $region21: #{nn_model_forward.1} parent=1 // pred_fallthru
      _
    %1096 = vsyncpa [#allocation3], 1

</llo_original>
